<compile_context>
chip_gen: v7x
topology: tpu7x:2x2x1
jax: 0.10.0
libtpu: 0.0.40
codegen_flags: <defaults>
</compile_context>

<pallas_src>
import functools

import jax
import jax.numpy as jnp
from jax.experimental import pallas as pl
from jax.experimental.pallas import tpu as pltpu

# ITU-R 601 luma coefficients (same as torchvision / pytorchvideo grayscale).
_W_R, _W_G, _W_B = 0.299, 0.587, 0.114

# Padded-VMEM byte budget per block (input block; output block is the same
# size).  2 in-buffers + 2 out-buffers ~= 4x this, < 32 MiB scoped VMEM.
_TARGET_BLOCK_BYTES = 6 * 1024 * 1024
_VMEM_LIMIT_BYTES = 32 * 1024 * 1024


def _sublane_pack(dtype_size: int) -> int:
    """Rows packed per sublane tile: f32 -> 8, bf16/f16 -> 16, 8-bit -> 32."""
    if dtype_size >= 4:
        return 8
    if dtype_size == 2:
        return 16
    return 32


# --------------------------------------------------------------------------
# Primary kernels: lane-concatenated layout, block = (F, 3*HW)
# --------------------------------------------------------------------------
def _gray_all_kernel_2d(hw, x_ref, o_ref):
    x = x_ref[...].astype(jnp.float32)                       # (F, 3*HW)
    gray = (_W_R * x[:, :hw]
            + _W_G * x[:, hw:2 * hw]
            + _W_B * x[:, 2 * hw:]).astype(o_ref.dtype)      # (F, HW)
    o_ref[:, :hw] = gray
    o_ref[:, hw:2 * hw] = gray
    o_ref[:, 2 * hw:] = gray


def _gray_random_kernel_2d(hw, m_ref, x_ref, o_ref):
    x = x_ref[...].astype(jnp.float32)                       # (F, 3*HW)
    m = m_ref[...]                                           # (F, 1) in {0,1}
    keep = 1.0 - m
    r = x[:, :hw]
    g = x[:, hw:2 * hw]
    b = x[:, 2 * hw:]
    gray = _W_R * r + _W_G * g + _W_B * b                    # (F, HW)
    o_ref[:, :hw] = (gray * m + r * keep).astype(o_ref.dtype)
    o_ref[:, hw:2 * hw] = (gray * m + g * keep).astype(o_ref.dtype)
    o_ref[:, 2 * hw:] = (gray * m + b * keep).astype(o_ref.dtype)


# --------------------------------------------------------------------------
# Fallback kernels: channel-as-sublane layout, block = (F, 3, HW_tile)
# --------------------------------------------------------------------------
def _gray_all_kernel_3d(x_ref, o_ref):
    xf = x_ref[...].astype(jnp.float32)                      # (F, 3, HW)
    gray = (_W_R * xf[:, 0:1, :] + _W_G * xf[:, 1:2, :]
            + _W_B * xf[:, 2:3, :])                          # (F, 1, HW)
    o_ref[...] = jnp.broadcast_to(gray, xf.shape).astype(o_ref.dtype)


def _gray_random_kernel_3d(m_ref, x_ref, o_ref):
    xf = x_ref[...].astype(jnp.float32)                      # (F, 3, HW)
    gray = (_W_R * xf[:, 0:1, :] + _W_G * xf[:, 1:2, :]
            + _W_B * xf[:, 2:3, :])
    gray3 = jnp.broadcast_to(gray, xf.shape)
    m = m_ref[...]                                           # (F, 1, 1)
    o_ref[...] = (gray3 * m + xf * (1.0 - m)).astype(o_ref.dtype)


# --------------------------------------------------------------------------
# Tile-size selection
# --------------------------------------------------------------------------
def _choose_frames_2d(n_frames, row_bytes, sub):
    """Frames/block for the (n_frames, 3*HW) layout; None -> use 3-D path."""
    p_max = (_TARGET_BLOCK_BYTES // row_bytes) // sub * sub  # padded row cap
    f_budget = min(n_frames, p_max)
    if f_budget <= 0:
        return None
    divisors = [d for d in range(1, f_budget + 1) if n_frames % d == 0]
    aligned = [d for d in divisors if d % sub == 0]          # no sublane pad
    if aligned:
        multi = [d for d in aligned if d <= n_frames // 2]   # keep >=2 steps
        return max(multi) if multi else max(aligned)
    if n_frames <= f_budget:
        return n_frames                                      # full-extent block
    return None


def _choose_tiles_3d(n_frames, hw, dtype_size):
    """(frames_per_block, hw_tile) for the (F, 3, HW_tile) fallback layout."""
    sub = _sublane_pack(dtype_size)
    padded_frame_bytes = sub * hw * dtype_size               # C=3 pads to sub
    if padded_frame_bytes <= _TARGET_BLOCK_BYTES:
        f_cap = min(n_frames, _TARGET_BLOCK_BYTES // padded_frame_bytes)
        if n_frames >= 2:
            f_cap = min(f_cap, max(1, n_frames // 2))        # keep >=2 steps
        frames_per_block = 1
        for d in range(1, int(f_cap) + 1):                   # largest divisor
            if n_frames % d == 0:
                frames_per_block = d
        return frames_per_block, hw
    # Single frame exceeds budget: tile flattened spatial axis in 128 chunks.
    hw_tile = hw
    if hw % 128 == 0:
        lane_budget = max(
            128, (_TARGET_BLOCK_BYTES // (sub * dtype_size)) // 128 * 128)
        best, cand = 0, 128
        while cand <= min(hw, lane_budget):
            if hw % cand == 0:
                best = cand
            cand += 128
        if best:
            hw_tile = best
    # TODO(synk): frames with HW not a multiple of 128 that exceed the block
    # budget keep a full-frame block; a 4-D (N*T,3,H,W) view tiling H would
    # be needed to bound VMEM for such exotic shapes.
    return 1, hw_tile


# --------------------------------------------------------------------------
# Public wrapper
# --------------------------------------------------------------------------
def to_gray(video: jax.Array, mode: str = "all", key=None) -> jax.Array:
    """Grayscale a video tensor.

    Args:
      video: (N, T, 3, H, W) array (NTCHW), floating-point dtype.
      mode:  'all' or 'random'.
      key:   PRNG key used only when mode == 'random'.
    """
    if mode not in ("all", "random"):
        raise Exception("mode can only be 'all' or 'random' ")
    if video.ndim != 5:
        raise Exception("Expects Video Tensor in 5D (NTCHW)")
    assert video.shape[2] == 3
    assert jnp.issubdtype(video.dtype, jnp.floating), "float video expected"
    # TODO(synk): the string (video-path decode) and list-of-tensors branches
    # of the original module have no Pallas equivalent and are not handled.

    N, T, C, H, W = video.shape
    n_frames = N * T
    hw = H * W
    dtype_size = jnp.dtype(video.dtype).itemsize
    sub = _sublane_pack(dtype_size)

    mask = None
    if mode == "random":
        if key is None:
            key = jax.random.PRNGKey(0)
        mask = jax.random.bernoulli(key, 0.5, (n_frames,)).astype(jnp.float32)

    frames_2d = None
    if hw % 128 == 0:
        frames_2d = _choose_frames_2d(n_frames, C * hw * dtype_size, sub)

    if frames_2d is not None:
        # ---- primary path: lane-concatenated channels, no sublane padding ----
        F = frames_2d
        x = video.reshape(n_frames, C * hw)      # contiguous merge -> free
        grid = (n_frames // F,)
        x_spec = pl.BlockSpec((F, C * hw), lambda i: (i, 0))
        out_shape = jax.ShapeDtypeStruct((n_frames, C * hw), video.dtype)
        cparams = pltpu.CompilerParams(
            dimension_semantics=("parallel",),
            vmem_limit_bytes=_VMEM_LIMIT_BYTES)
        if mode == "all":
            out = pl.pallas_call(
                functools.partial(_gray_all_kernel_2d, hw),
                out_shape=out_shape, grid=grid,
                in_specs=[x_spec], out_specs=x_spec,
                compiler_params=cparams,
            )(x)
        else:
            m = mask.reshape(n_frames, 1)
            m_spec = pl.BlockSpec((F, 1), lambda i: (i, 0))
            out = pl.pallas_call(
                functools.partial(_gray_random_kernel_2d, hw),
                out_shape=out_shape, grid=grid,
                in_specs=[m_spec, x_spec], out_specs=x_spec,
                compiler_params=cparams,
            )(m, x)
        return out.reshape(N, T, C, H, W)

    # ---- fallback path: channel-as-sublane 3-D layout ----
    F, hw_tile = _choose_tiles_3d(n_frames, hw, dtype_size)
    x = video.reshape(n_frames, C, hw)
    grid = (n_frames // F, hw // hw_tile)
    x_spec = pl.BlockSpec((F, C, hw_tile), lambda i, j: (i, 0, j))
    out_shape = jax.ShapeDtypeStruct((n_frames, C, hw), video.dtype)
    cparams = pltpu.CompilerParams(
        dimension_semantics=("parallel", "parallel"),
        vmem_limit_bytes=_VMEM_LIMIT_BYTES)
    if mode == "all":
        out = pl.pallas_call(
            _gray_all_kernel_3d, out_shape=out_shape, grid=grid,
            in_specs=[x_spec], out_specs=x_spec,
            compiler_params=cparams,
        )(x)
    else:
        m = mask.reshape(n_frames, 1, 1)
        m_spec = pl.BlockSpec((F, 1, 1), lambda i, j: (i, 0, 0))
        out = pl.pallas_call(
            _gray_random_kernel_3d, out_shape=out_shape, grid=grid,
            in_specs=[m_spec, x_spec], out_specs=x_spec,
            compiler_params=cparams,
        )(m, x)
    return out.reshape(N, T, C, H, W)


if __name__ == "__main__":
    key = jax.random.PRNGKey(0)
    # Small NTCHW video: batch=2, frames=4, channels=3, spatial=16x16.
    video = jax.random.uniform(key, (2, 4, 3, 16, 16), dtype=jnp.float32)

    # ---- mode='all' (primary lane-dense path) ----
    out_all = jax.block_until_ready(to_gray(video, mode="all"))
    gray_ref = (_W_R * video[:, :, 0] + _W_G * video[:, :, 1]
                + _W_B * video[:, :, 2])
    ref_all = jnp.stack([gray_ref, gray_ref, gray_ref], axis=2)
    assert out_all.shape == video.shape
    assert jnp.max(jnp.abs(out_all - ref_all)) < 1e-5

    # ---- mode='random' (deterministic key) ----
    rkey = jax.random.PRNGKey(1)
    out_rnd = jax.block_until_ready(to_gray(video, mode="random", key=rkey))
    mask = jax.random.bernoulli(rkey, 0.5, (2 * 4,)).astype(jnp.float32)
    mask = mask.reshape(2, 4, 1, 1, 1)
    ref_rnd = ref_all * mask + video * (1.0 - mask)
    assert jnp.max(jnp.abs(out_rnd - ref_rnd)) < 1e-5

    # ---- fallback 3-D path (HW=225 not a multiple of 128) ----
    video2 = jax.random.uniform(jax.random.PRNGKey(2), (1, 8, 3, 15, 15),
                                dtype=jnp.float32)
    out2 = jax.block_until_ready(to_gray(video2, mode="all"))
    gray2 = (_W_R * video2[:, :, 0] + _W_G * video2[:, :, 1]
             + _W_B * video2[:, :, 2])
    ref2 = jnp.stack([gray2, gray2, gray2], axis=2)
    assert jnp.max(jnp.abs(out2 - ref2)) < 1e-5

    print("KERNEL_OK")
</pallas_src>

<mosaic_0001>
module attributes {stable_mosaic.version = 11 : i64} {
  func.func @_gray_all_kernel_2d(%arg0: i32, %arg1: memref<8x768xf32, #tpu.memory_space<vmem>>, %arg2: memref<8x768xf32, #tpu.memory_space<vmem>>) attributes {dimension_semantics = [#tpu.dimension_semantics<parallel>], iteration_bounds = array<i64: 1>, scalar_prefetch = 0 : i64, scratch_operands = 0 : i64, tpu.core_type = #tpu.core_type<tc>, window_params = [{transform_indices = @transform_0, window_bounds = array<i64: 8, 768>}, {transform_indices = @transform_1, window_bounds = array<i64: 8, 768>}]} {
    %c0 = arith.constant 0 : index
    %c0_0 = arith.constant 0 : index
    %0 = vector.load %arg1[%c0, %c0_0] : memref<8x768xf32, #tpu.memory_space<vmem>>, vector<8x768xf32>
    %1 = vector.extract_strided_slice %0 {offsets = [0, 0], sizes = [8, 256], strides = [1, 1]} : vector<8x768xf32> to vector<8x256xf32>
    %cst = arith.constant 2.990000e-01 : f32
    %2 = vector.broadcast %cst : f32 to vector<8x256xf32>
    %3 = arith.mulf %2, %1 : vector<8x256xf32>
    %4 = vector.extract_strided_slice %0 {offsets = [0, 256], sizes = [8, 256], strides = [1, 1]} : vector<8x768xf32> to vector<8x256xf32>
    %cst_1 = arith.constant 5.870000e-01 : f32
    %5 = vector.broadcast %cst_1 : f32 to vector<8x256xf32>
    %6 = arith.mulf %5, %4 : vector<8x256xf32>
    %7 = arith.addf %3, %6 : vector<8x256xf32>
    %8 = vector.extract_strided_slice %0 {offsets = [0, 512], sizes = [8, 256], strides = [1, 1]} : vector<8x768xf32> to vector<8x256xf32>
    %cst_2 = arith.constant 1.140000e-01 : f32
    %9 = vector.broadcast %cst_2 : f32 to vector<8x256xf32>
    %10 = arith.mulf %9, %8 : vector<8x256xf32>
    %11 = arith.addf %7, %10 : vector<8x256xf32>
    %c0_3 = arith.constant 0 : index
    %c0_4 = arith.constant 0 : index
    %12 = vector.load %arg2[%c0_3, %c0_4] : memref<8x768xf32, #tpu.memory_space<vmem>>, vector<8x256xf32>
    tpu.vector_store %arg2[%c0_3, %c0_4], %11 {strides = array<i32>} : memref<8x768xf32, #tpu.memory_space<vmem>>, vector<8x256xf32>,
    %c0_5 = arith.constant 0 : index
    %c256 = arith.constant 256 : index
    %13 = vector.load %arg2[%c0_5, %c256] : memref<8x768xf32, #tpu.memory_space<vmem>>, vector<8x256xf32>
    tpu.vector_store %arg2[%c0_5, %c256], %11 {strides = array<i32>} : memref<8x768xf32, #tpu.memory_space<vmem>>, vector<8x256xf32>,
    %c0_6 = arith.constant 0 : index
    %c512 = arith.constant 512 : index
    %14 = vector.load %arg2[%c0_6, %c512] : memref<8x768xf32, #tpu.memory_space<vmem>>, vector<8x256xf32>
    tpu.vector_store %arg2[%c0_6, %c512], %11 {strides = array<i32>} : memref<8x768xf32, #tpu.memory_space<vmem>>, vector<8x256xf32>,
    return
  }
  func.func @transform_0(%arg0: i32) -> (i32, i32) {
    %c0_i32 = arith.constant 0 : i32
    %c0_i32_0 = arith.constant 0 : i32
    return %arg0, %c0_i32 : i32, i32
  }
  func.func @transform_1(%arg0: i32) -> (i32, i32) {
    %c0_i32 = arith.constant 0 : i32
    %c0_i32_0 = arith.constant 0 : i32
    return %arg0, %c0_i32 : i32, i32
  }
}

</mosaic_0001>

<llo_original>
// kernel: tpu_custom_call.1
$region0: #{tpu_custom_call.1}
  #allocation0 [shape = 'u32[]', space=smem, size = 0x4, offset = 0x4, fixed_abs, tag = 'smem constant byte address 0x4 - core index']
  #allocation1 [shape = 'u32[144,128]{1,0:T(1,128)}', space=vmem, size = 0x12000, scoped, tag = 'internal scratch']
  %s0 = inlined_call_operand.hbm [shape: f32[8,768], index: 0, kind: input, shape index: {}]
  %s1 = inlined_call_operand.hbm [shape: f32[8,768], index: 1, kind: output, shape index: {}]
  %s2 = sld [smem:[#allocation0]]
  $region18: #{tpu_custom_call.1} parent=0
    _
  %s4 = ssub.s32 1, %s2
  %s5 = scalar_select 0, %s4, %s2
  $region1: #{tpu_custom_call.1} parent=0
    #allocation2 [shape = 'u8[24576]{0}', space=vmem, size = 0x6000, scoped, tag = 'input window, operand 0, single buffered']
    #allocation3 [shape = 's32[1]{0}', space=sflag, size = 0x4, scoped, tag = 'scoped memory for tpu_custom_call.1']
    #allocation4 [shape = 's32[1]{0}', space=sflag, size = 0x4, scoped, tag = 'scoped memory for tpu_custom_call.1']
    #allocation5 [shape = 'u8[24576]{0}', space=vmem, size = 0x6000, scoped, tag = 'output window, operand 0, single buffered']
    %6 = vsyncpa [#allocation3], 0
    %7 = vsyncpa [#allocation4], 0
    // Predicated region
    $region2: #{tpu_custom_call.1} parent=1 // pred_check
      _
    $region3: #{tpu_custom_call.1} parent=1 // pred_check_branch
      %9 = sbr.rel (0) target = $region5
    $region4: #{tpu_custom_call.1} parent=1 // pred_region
      %s11 = ssub.s32 768, 768
      %12 = vsyncadd [#allocation3], %s11
      %s14 = sshll.u32 [#allocation2], 4
      %s15 = int_to_ptr.vmem [resolvable:$true] %s14
      %17 = dma.hbm_to_vmem [thread:$0]  %s0, 768, %s15, [#allocation3]
    $region5: #{tpu_custom_call.1} parent=1 // pred_fallthru
      _
    // Predicated region
    $region6: #{tpu_custom_call.1} parent=1 // pred_check
      _
    $region7: #{tpu_custom_call.1} parent=1 // pred_check_branch
      %19 = sbr.rel (0) target = $region9
    $region8: #{tpu_custom_call.1} parent=1 // pred_region
      %20 = dma.done [#allocation3], 768
    $region9: #{tpu_custom_call.1} parent=1 // pred_fallthru
      _
    %v21 = vld [vmem:[#allocation2] sm:$0xff]
    %v22 = vld [vmem:[#allocation2 + $0x8] sm:$0xff]
    %v23 = vld [vmem:[#allocation2 + $0x10] sm:$0xff]
    %v24 = vld [vmem:[#allocation2 + $0x18] sm:$0xff]
    %v25 = vld [vmem:[#allocation2 + $0x20] sm:$0xff]
    %v26 = vld [vmem:[#allocation2 + $0x28] sm:$0xff]
    %v27 = vmul.f32 %v21, 0.299
    %v28 = vmul.f32 %v22, 0.299
    %v29 = vmul.f32 %v23, 0.587
    %v30 = vmul.f32 %v24, 0.587
    %v31 = vadd.f32 %v27, %v29
    %v32 = vadd.f32 %v28, %v30
    %v33 = vmul.f32 %v25, 0.114
    %v34 = vmul.f32 %v26, 0.114
    %v35 = vadd.f32 %v31, %v33
    %v36 = vadd.f32 %v32, %v34
    %37 = vst [vmem:[#allocation5] sm:$0xff] %v35
    %38 = vst [vmem:[#allocation5 + $0x8] sm:$0xff] %v36
    %39 = vst [vmem:[#allocation5 + $0x10] sm:$0xff] %v35
    %40 = vst [vmem:[#allocation5 + $0x18] sm:$0xff] %v36
    %41 = vst [vmem:[#allocation5 + $0x20] sm:$0xff] %v35
    %42 = vst [vmem:[#allocation5 + $0x28] sm:$0xff] %v36
    // Predicated region
    $region10: #{tpu_custom_call.1} parent=1 // pred_check
      _
    $region11: #{tpu_custom_call.1} parent=1 // pred_check_branch
      %44 = sbr.rel (0) target = $region13
    $region12: #{tpu_custom_call.1} parent=1 // pred_region
      %s46 = ssub.s32 768, 768
      %47 = vsyncadd [#allocation4], %s46
      %s49 = sshll.u32 [#allocation5], 4
      %s50 = int_to_ptr.vmem [resolvable:$true] %s49
      %52 = dma.vmem_to_hbm [thread:$0]  %s50, 768, %s1, [#allocation4]
    $region13: #{tpu_custom_call.1} parent=1 // pred_fallthru
      _
    // Predicated region
    $region14: #{tpu_custom_call.1} parent=1 // pred_check
      _
    $region15: #{tpu_custom_call.1} parent=1 // pred_check_branch
      %54 = sbr.rel (0) target = $region17
    $region16: #{tpu_custom_call.1} parent=1 // pred_region
      %55 = dma.done [#allocation4], 768
    $region17: #{tpu_custom_call.1} parent=1 // pred_fallthru
      _
    %56 = vsyncpa [#allocation3], 1
    %57 = vsyncpa [#allocation4], 1

</llo_original>
